<compile_context>
chip_gen: v7x
topology: tpu7x:2x2x1
jax: 0.10.0
libtpu: 0.0.40
codegen_flags: <defaults>
</compile_context>

<pallas_src>
import math
import numpy as np
import jax
import jax.numpy as jnp
from jax.experimental import pallas as pl
from jax.experimental.pallas import tpu as pltpu

_PACK_BITS = 16  # mask columns packed per int32 (exact through bf16 MXU + f32 acc)


def _round_up(v, m):
    return ((v + m - 1) // m) * m


def _params(sem, est_bytes):
    # Explicit scoped-VMEM budget (default is only 16 MiB on v5e / 32 MiB on v6e+).
    limit = int(min(100 * 2**20, max(32 * 2**20, 2 * int(est_bytes))))
    return pltpu.CompilerParams(dimension_semantics=sem, vmem_limit_bytes=limit)


def _onehot(eq, dtype):
    # exact 0/1 in the matmul input dtype; avoids a large f32 intermediate.
    return jnp.where(eq, jnp.ones((), dtype), jnp.zeros((), dtype))


def _stack_tiles(a, b, tile):
    # Build an array whose i-th (2*tile) block is [a_tile_i ; b_tile_i] so one
    # fused one-hot matmul gathers both index streams in a single MXU call.
    nt = a.shape[0] // tile
    return jnp.concatenate([a.reshape(nt, tile), b.reshape(nt, tile)],
                           axis=1).reshape(nt * 2 * tile, 1)


# ---------------- Kernel 1: line-graph node features --------------------
def _lg_node_feat_kernel(sd_ref, ea_ref, x_ref, out_ref, acc_ref):
    # sd_ref : (2*TE, 1) int32  -- [src_tile ; dst_tile] node indices
    # ea_ref : (TE, F)          -- edge_attr tile (used only on the last k step)
    # x_ref  : (TN, F)          -- node-feature tile for node ids [k*TN, (k+1)*TN)
    # acc_ref: (2*TE, F) f32    -- [x[src] ; x[dst]] accumulator over the node axis
    k = pl.program_id(1)
    te = acc_ref.shape[0] // 2
    tn, f = x_ref.shape

    @pl.when(k == 0)
    def _():
        acc_ref[...] = jnp.zeros_like(acc_ref)

    node_iota = jax.lax.broadcasted_iota(jnp.int32, (2 * te, tn), 1) + k * tn
    onehot = _onehot(sd_ref[...] == node_iota, x_ref.dtype)
    acc_ref[...] += jnp.dot(onehot, x_ref[...],
                            preferred_element_type=jnp.float32)

    @pl.when(k == pl.num_programs(1) - 1)
    def _():
        ea = ea_ref[...].astype(jnp.float32)
        # NOTE: for best store efficiency F should be a multiple of 128.
        out_ref[:, :f] = ((acc_ref[:te, :] + ea) * 0.5).astype(out_ref.dtype)
        out_ref[:, f:] = ((acc_ref[te:, :] + ea) * 0.5).astype(out_ref.dtype)


def lg_node_features(x, edge_attr, src, dst, tile_e=512, tile_n=512):
    E, F = edge_attr.shape
    N = x.shape[0]
    tile_e = min(tile_e, _round_up(max(E, 1), 128))
    tile_n = min(tile_n, _round_up(max(N, 1), 128))
    e_pad = _round_up(max(E, 1), tile_e)
    n_pad = _round_up(N, tile_n)
    sd = _stack_tiles(jnp.pad(src, (0, e_pad - E)),
                      jnp.pad(dst, (0, e_pad - E)), tile_e)       # (2*e_pad, 1)
    ea_p = jnp.pad(edge_attr, ((0, e_pad - E), (0, 0)))
    x_p = jnp.pad(x, ((0, n_pad - N), (0, 0)))
    grid = (e_pad // tile_e, n_pad // tile_n)
    isz = x.dtype.itemsize
    est = (2 * (tile_n * F + tile_e * F + tile_e * 2 * F) * isz
           + 2 * tile_e * F * 4 + 4 * tile_e * tile_n * isz)
    out = pl.pallas_call(
        _lg_node_feat_kernel,
        grid_spec=pltpu.PrefetchScalarGridSpec(
            num_scalar_prefetch=0,
            grid=grid,
            in_specs=[
                pl.BlockSpec((2 * tile_e, 1), lambda i, k: (i, 0)),   # [src;dst] tile
                pl.BlockSpec((tile_e, F), lambda i, k: (i, 0)),       # edge_attr tile
                pl.BlockSpec((tile_n, F), lambda i, k: (k, 0)),       # node-feat tile
            ],
            out_specs=pl.BlockSpec((tile_e, 2 * F), lambda i, k: (i, 0)),
            scratch_shapes=[pltpu.VMEM((2 * tile_e, F), jnp.float32)],
        ),
        out_shape=jax.ShapeDtypeStruct((e_pad, 2 * F), x.dtype),
        compiler_params=_params(("parallel", "arbitrary"), est),
    )(sd, ea_p, x_p)
    return out[:E]


# ---------------- Kernel 2: line-graph adjacency (bit-packed) -----------
def _lg_adjacency_kernel(dst_col_ref, src_col_ref, src_row_ref, dst_row_ref,
                         pack_ref, out_ref):
    # mask[i, j] = (dst[i] == src[j]) & (src[i] != dst[j]); 16 adjacent columns
    # are packed into one int32 by an MXU matmul against the packing matrix.
    m = jnp.logical_and(dst_col_ref[...] == src_row_ref[...],
                        src_col_ref[...] != dst_row_ref[...])
    mb = _onehot(m, jnp.bfloat16)
    packed = jnp.dot(mb, pack_ref[...], preferred_element_type=jnp.float32)
    out_ref[...] = packed.astype(jnp.int32)


def lg_adjacency_packed(src, dst, tile_i=512, tile_j=2048):
    # Returns (E, e_pad // 16) int32; bit b of column g is mask[:, 16*g + b].
    E = src.shape[0]
    step = (tile_i * tile_j) // math.gcd(tile_i, tile_j)  # cover both axes exactly
    e_pad = _round_up(max(E, 1), step)
    pad = e_pad - E
    src_p = jnp.pad(src, (0, pad), constant_values=-1)    # -1 never matches a node
    dst_p = jnp.pad(dst, (0, pad), constant_values=-1)
    dst_col = dst_p.reshape(e_pad, 1)
    src_col = src_p.reshape(e_pad, 1)
    src_row = src_p.reshape(1, e_pad)
    dst_row = dst_p.reshape(1, e_pad)
    g = tile_j // _PACK_BITS
    pack_np = np.zeros((tile_j, g), np.float32)
    pack_np[np.arange(tile_j), np.arange(tile_j) // _PACK_BITS] = \
        2.0 ** (np.arange(tile_j) % _PACK_BITS)
    pack = jnp.asarray(pack_np, dtype=jnp.bfloat16)       # powers of two: exact
    grid = (e_pad // tile_i, e_pad // tile_j)
    est = 12 * tile_i * tile_j + 4 * tile_j * g + 8 * tile_i * g
    out = pl.pallas_call(
        _lg_adjacency_kernel,
        grid_spec=pltpu.PrefetchScalarGridSpec(
            num_scalar_prefetch=0,
            grid=grid,
            in_specs=[
                pl.BlockSpec((tile_i, 1), lambda i, j: (i, 0)),
                pl.BlockSpec((tile_i, 1), lambda i, j: (i, 0)),
                pl.BlockSpec((1, tile_j), lambda i, j: (0, j)),
                pl.BlockSpec((1, tile_j), lambda i, j: (0, j)),
                pl.BlockSpec((tile_j, g), lambda i, j: (0, 0)),   # packing matrix
            ],
            out_specs=pl.BlockSpec((tile_i, g), lambda i, j: (i, j)),
        ),
        out_shape=jax.ShapeDtypeStruct((e_pad, e_pad // _PACK_BITS), jnp.int32),
        compiler_params=_params(("parallel", "parallel"), est),
    )(dst_col, src_col, src_row, dst_row, pack)
    return out[:E]


def _unpack_mask_rows(packed_np, n_cols):
    shifts = np.arange(_PACK_BITS, dtype=np.int32)
    bits = (packed_np[:, :, None] >> shifts) & 1
    return bits.reshape(packed_np.shape[0], -1)[:, :n_cols]


# ---------------- Kernel 3: line-graph edge attributes ------------------
def _lg_edge_attr_kernel(sh_ref, iijj_ref, x_ref, ea_ref, out_ref, acc_ref):
    # sh_ref  : (TM, 1) int32   -- shared node index per line-graph edge
    # iijj_ref: (2*TM, 1) int32 -- [i_idx_tile ; j_idx_tile] original-edge ids
    # x_ref   : (Np, F) resident original node features
    # ea_ref  : (TK, F)         -- edge_attr tile for edge ids [k*TK, (k+1)*TK)
    # acc_ref : (2*TM, F) f32   -- [x[sh]+ea[i] ; x[sh]+ea[j]] accumulator
    k = pl.program_id(1)
    tm = sh_ref.shape[0]
    n = x_ref.shape[0]
    tk, f = ea_ref.shape

    @pl.when(k == 0)
    def _():
        node_iota = jax.lax.broadcasted_iota(jnp.int32, (tm, n), 1)
        oh = _onehot(sh_ref[...] == node_iota, x_ref.dtype)
        xs = jnp.dot(oh, x_ref[...], preferred_element_type=jnp.float32)
        acc_ref[:tm, :] = xs
        acc_ref[tm:, :] = xs

    edge_iota = jax.lax.broadcasted_iota(jnp.int32, (2 * tm, tk), 1) + k * tk
    oh_e = _onehot(iijj_ref[...] == edge_iota, ea_ref.dtype)
    acc_ref[...] += jnp.dot(oh_e, ea_ref[...],
                            preferred_element_type=jnp.float32)

    @pl.when(k == pl.num_programs(1) - 1)
    def _():
        out_ref[:, :f] = (acc_ref[:tm, :] * 0.5).astype(out_ref.dtype)
        out_ref[:, f:] = (acc_ref[tm:, :] * 0.5).astype(out_ref.dtype)


def lg_edge_attributes(x, edge_attr, i_idx, j_idx, shared_idx,
                       tile_m=512, tile_k=512):
    E2 = i_idx.shape[0]
    N, F = x.shape
    E = edge_attr.shape[0]
    tile_m = min(tile_m, _round_up(max(E2, 1), 128))
    tile_k = min(tile_k, _round_up(max(E, 1), 128))
    m_pad = _round_up(max(E2, 1), tile_m)
    k_pad = _round_up(max(E, 1), tile_k)
    n_pad = _round_up(N, 8)
    sh_p = jnp.pad(shared_idx, (0, m_pad - E2)).reshape(m_pad, 1)
    iijj = _stack_tiles(jnp.pad(i_idx, (0, m_pad - E2)),
                        jnp.pad(j_idx, (0, m_pad - E2)), tile_m)
    x_p = jnp.pad(x, ((0, n_pad - N), (0, 0)))
    ea_p = jnp.pad(edge_attr, ((0, k_pad - E), (0, 0)))
    grid = (m_pad // tile_m, k_pad // tile_k)
    isz = x.dtype.itemsize
    # TODO(synk): the node table stays VMEM-resident; tile it over a third grid
    # axis for very large N (same pattern as the edge-attr contraction axis).
    est = (2 * n_pad * F * isz + 2 * (tile_k * F + tile_m * 2 * F) * isz
           + 2 * tile_m * F * 4 + 4 * tile_m * tile_k * isz)
    out = pl.pallas_call(
        _lg_edge_attr_kernel,
        grid_spec=pltpu.PrefetchScalarGridSpec(
            num_scalar_prefetch=0,
            grid=grid,
            in_specs=[
                pl.BlockSpec((tile_m, 1), lambda i, k: (i, 0)),
                pl.BlockSpec((2 * tile_m, 1), lambda i, k: (i, 0)),
                pl.BlockSpec((n_pad, F), lambda i, k: (0, 0)),    # resident node feats
                pl.BlockSpec((tile_k, F), lambda i, k: (k, 0)),   # streamed edge-attr
            ],
            out_specs=pl.BlockSpec((tile_m, 2 * F), lambda i, k: (i, 0)),
            scratch_shapes=[pltpu.VMEM((2 * tile_m, F), jnp.float32)],
        ),
        out_shape=jax.ShapeDtypeStruct((m_pad, 2 * F), x.dtype),
        compiler_params=_params(("parallel", "arbitrary"), est),
    )(sh_p, iijj, x_p, ea_p)
    return out[:E2]


# ---------------- Wrapper reproducing graph2linegraph.forward -----------
def graph2linegraph_forward(batch, variant=1):
    # TODO(synk): variant==8 (leaf self-loop augmentation + argsort) and
    # variant==7 (batch remap from ptr) are not implemented; variant=1 only.
    assert variant == 1

    x = batch["x"]
    edge_index = batch["edge_index"]
    edge_attr = batch["edge_attr"]

    out = dict(batch)
    out["shape"] = x.shape
    out["org_x"] = x
    out["org_edge_index"] = edge_index
    out["org_edge_attr"] = edge_attr
    out["org_batch"] = batch["batch"]

    lg_node_idx = edge_index.T                      # (E, 2)
    out["lg_node_idx"] = lg_node_idx
    src = edge_index[0].astype(jnp.int32)
    dst = edge_index[1].astype(jnp.int32)
    E = int(src.shape[0])
    F = int(x.shape[1])

    # --- new node features of the line graph (Pallas kernel 1) ---
    out["x"] = lg_node_features(x, edge_attr, src, dst)

    if "x0" in batch:
        out["org_x0"] = batch["x0"]
        x0g = batch["x0"][lg_node_idx]              # plain jnp gather
        out["x0"] = x0g.reshape(x0g.shape[0], -1)

    # --- line-graph connectivity (Pallas kernel 2, 16x bit-packed int32) ---
    packed = lg_adjacency_packed(src, dst)
    # TODO(synk): torch.nonzero is dynamic-shape; the nonzero itself stays on the
    # host (bit-packed mask keeps HBM writeback and the D2H transfer 16x smaller).
    packed_np = np.asarray(jax.device_get(packed))
    mask_np = _unpack_mask_rows(packed_np, E)
    i_np, j_np = np.nonzero(mask_np)                # row-major == torch.nonzero order
    E2 = int(i_np.shape[0])
    lg_edge_idx = jnp.asarray(np.stack([i_np, j_np], axis=1), dtype=jnp.int32)
    out["edge_index"] = lg_edge_idx.T               # (2, E2)

    if E2 == 0:
        out["edge_attr"] = jnp.zeros((0, 2 * F), dtype=x.dtype)
        return out

    i_idx = jnp.asarray(i_np, dtype=jnp.int32)
    j_idx = jnp.asarray(j_np, dtype=jnp.int32)
    dst_np = np.asarray(jax.device_get(dst))
    shared_idx = jnp.asarray(dst_np[i_np], dtype=jnp.int32)   # == new_edge_idx[:, 0, 1]
    # TODO(synk): start/endEdgeAttr resolved by direct edge indexing; matches the
    # torch where/all lookup for graphs without duplicated edges.
    out["edge_attr"] = lg_edge_attributes(x, edge_attr, i_idx, j_idx, shared_idx)
    return out


if __name__ == "__main__":
    key = jax.random.PRNGKey(0)
    N, F = 8, 16

    # directed ring in both directions -> E = 16 edges
    fwd_e = np.stack([np.arange(N), (np.arange(N) + 1) % N])
    bwd_e = np.stack([(np.arange(N) + 1) % N, np.arange(N)])
    edge_index = jnp.asarray(np.concatenate([fwd_e, bwd_e], axis=1), dtype=jnp.int32)
    E = edge_index.shape[1]

    kx, ke = jax.random.split(key)
    x = jax.random.normal(kx, (N, F), dtype=jnp.float32)
    edge_attr = jax.random.normal(ke, (E, F), dtype=jnp.float32)
    batch_vec = jnp.zeros((N,), dtype=jnp.int32)

    batch = {"x": x, "edge_index": edge_index, "edge_attr": edge_attr, "batch": batch_vec}
    out = graph2linegraph_forward(batch, variant=1)
    jax.block_until_ready(out["x"])
    jax.block_until_ready(out["edge_attr"])

    # ---- lightweight numpy reference check of the semantics ----
    xn, ean, ein = np.asarray(x), np.asarray(edge_attr), np.asarray(edge_index)
    lgn = ein.T
    ref_x = 0.5 * (np.concatenate([xn[lgn[:, 0]], xn[lgn[:, 1]]], axis=1)
                   + np.concatenate([ean, ean], axis=1))
    assert np.allclose(np.asarray(out["x"]), ref_x, atol=1e-5)

    adj = (lgn[:, 1][:, None] == lgn[:, 0][None, :]) & (lgn[:, 0][:, None] != lgn[:, 1][None, :])
    ii, jj = np.nonzero(adj)
    assert np.array_equal(np.asarray(out["edge_index"]), np.stack([ii, jj]).astype(np.int32))

    ref_ea = 0.5 * (np.concatenate([xn[lgn[ii, 1]], xn[lgn[ii, 1]]], axis=1)
                    + np.concatenate([ean[ii], ean[jj]], axis=1))
    assert np.allclose(np.asarray(out["edge_attr"]), ref_ea, atol=1e-5)

    print("KERNEL_OK")
</pallas_src>

<mosaic_0001>
module attributes {stable_mosaic.version = 11 : i64} {
  func.func @_lg_node_feat_kernel(%arg0: i32, %arg1: i32, %arg2: memref<256x1xi32, #tpu.memory_space<vmem>>, %arg3: memref<128x16xf32, #tpu.memory_space<vmem>>, %arg4: memref<128x16xf32, #tpu.memory_space<vmem>>, %arg5: memref<128x32xf32, #tpu.memory_space<vmem>>, %arg6: memref<256x16xf32, #tpu.memory_space<vmem>>) attributes {dimension_semantics = [#tpu.dimension_semantics<parallel>, #tpu.dimension_semantics<arbitrary>], iteration_bounds = array<i64: 1, 1>, scalar_prefetch = 0 : i64, scratch_operands = 1 : i64, tpu.core_type = #tpu.core_type<tc>, window_params = [{transform_indices = @transform_0, window_bounds = array<i64: 256, 1>}, {transform_indices = @transform_1, window_bounds = array<i64: 128, 16>}, {transform_indices = @transform_2, window_bounds = array<i64: 128, 16>}, {transform_indices = @transform_3, window_bounds = array<i64: 128, 32>}]} {
    %c0_i32 = arith.constant 0 : i32
    %0 = arith.cmpi eq, %arg1, %c0_i32 : i32
    %1 = arith.extui %0 : i1 to i32
    %c0_i32_0 = arith.constant 0 : i32
    %2 = arith.cmpi ne, %1, %c0_i32_0 : i32
    scf.if %2 {
      %cst_12 = arith.constant 0.000000e+00 : f32
      %21 = vector.broadcast %cst_12 : f32 to vector<256x16xf32>
      %c0_13 = arith.constant 0 : index
      %c0_14 = arith.constant 0 : index
      %22 = vector.load %arg6[%c0_13, %c0_14] : memref<256x16xf32, #tpu.memory_space<vmem>>, vector<256x16xf32>
      tpu.vector_store %arg6[%c0_13, %c0_14], %21 {strides = array<i32>} : memref<256x16xf32, #tpu.memory_space<vmem>>, vector<256x16xf32>,
    } else {
    }
    %3 = tpu.iota {dimensions = array<i32: 1>} : vector<256x128xi32>
    %c128_i32 = arith.constant 128 : i32
    %4 = arith.muli %arg1, %c128_i32 : i32
    %5 = vector.broadcast %4 : i32 to vector<256x128xi32>
    %6 = arith.addi %3, %5 : vector<256x128xi32>
    %c0 = arith.constant 0 : index
    %c0_1 = arith.constant 0 : index
    %7 = vector.load %arg2[%c0, %c0_1] : memref<256x1xi32, #tpu.memory_space<vmem>>, vector<256x1xi32>
    %8 = vector.broadcast %7 : vector<256x1xi32> to vector<256x128xi32>
    %9 = arith.cmpi eq, %8, %6 : vector<256x128xi32>
    %cst = arith.constant 1.000000e+00 : f32
    %cst_2 = arith.constant 0.000000e+00 : f32
    %10 = vector.broadcast %cst : f32 to vector<256x128xf32>
    %11 = vector.broadcast %cst_2 : f32 to vector<256x128xf32>
    %12 = arith.select %9, %10, %11 : vector<256x128xi1>, vector<256x128xf32>
    %c0_3 = arith.constant 0 : index
    %c0_4 = arith.constant 0 : index
    %13 = vector.load %arg6[%c0_3, %c0_4] : memref<256x16xf32, #tpu.memory_space<vmem>>, vector<256x16xf32>
    %c0_5 = arith.constant 0 : index
    %c0_6 = arith.constant 0 : index
    %14 = vector.load %arg4[%c0_5, %c0_6] : memref<128x16xf32, #tpu.memory_space<vmem>>, vector<128x16xf32>
    %cst_7 = arith.constant dense<0.000000e+00> : vector<256x16xf32>
    %15 = tpu.matmul %12, %14, %cst_7 {dimension_numbers = #tpu.dot_dimension_numbers<[1], [0], [0], [1], [0, 0, 1, 1], [], []>} : vector<256x128xf32>, vector<128x16xf32>, vector<256x16xf32> -> vector<256x16xf32>
    %16 = arith.addf %13, %15 : vector<256x16xf32>
    %c0_8 = arith.constant 0 : index
    %c0_9 = arith.constant 0 : index
    %17 = vector.load %arg6[%c0_8, %c0_9] : memref<256x16xf32, #tpu.memory_space<vmem>>, vector<256x16xf32>
    tpu.vector_store %arg6[%c0_8, %c0_9], %16 {strides = array<i32>} : memref<256x16xf32, #tpu.memory_space<vmem>>, vector<256x16xf32>,
    %c0_i32_10 = arith.constant 0 : i32
    %18 = arith.cmpi eq, %arg1, %c0_i32_10 : i32
    %19 = arith.extui %18 : i1 to i32
    %c0_i32_11 = arith.constant 0 : i32
    %20 = arith.cmpi ne, %19, %c0_i32_11 : i32
    scf.if %20 {
      %c0_12 = arith.constant 0 : index
      %c0_13 = arith.constant 0 : index
      %21 = vector.load %arg3[%c0_12, %c0_13] : memref<128x16xf32, #tpu.memory_space<vmem>>, vector<128x16xf32>
      %c0_14 = arith.constant 0 : index
      %c0_15 = arith.constant 0 : index
      %22 = vector.load %arg6[%c0_14, %c0_15] : memref<256x16xf32, #tpu.memory_space<vmem>>, vector<128x16xf32>
      %23 = arith.addf %22, %21 : vector<128x16xf32>
      %cst_16 = arith.constant 5.000000e-01 : f32
      %24 = vector.broadcast %cst_16 : f32 to vector<128x16xf32>
      %25 = arith.mulf %23, %24 : vector<128x16xf32>
      %c0_17 = arith.constant 0 : index
      %c0_18 = arith.constant 0 : index
      %26 = vector.load %arg5[%c0_17, %c0_18] : memref<128x32xf32, #tpu.memory_space<vmem>>, vector<128x16xf32>
      tpu.vector_store %arg5[%c0_17, %c0_18], %25 {strides = array<i32>} : memref<128x32xf32, #tpu.memory_space<vmem>>, vector<128x16xf32>,
      %c128 = arith.constant 128 : index
      %c0_19 = arith.constant 0 : index
      %27 = vector.load %arg6[%c128, %c0_19] : memref<256x16xf32, #tpu.memory_space<vmem>>, vector<128x16xf32>
      %28 = arith.addf %27, %21 : vector<128x16xf32>
      %cst_20 = arith.constant 5.000000e-01 : f32
      %29 = vector.broadcast %cst_20 : f32 to vector<128x16xf32>
      %30 = arith.mulf %28, %29 : vector<128x16xf32>
      %c0_21 = arith.constant 0 : index
      %c16 = arith.constant 16 : index
      %31 = vector.load %arg5[%c0_21, %c16] : memref<128x32xf32, #tpu.memory_space<vmem>>, vector<128x16xf32>
      tpu.vector_store %arg5[%c0_21, %c16], %30 {strides = array<i32>} : memref<128x32xf32, #tpu.memory_space<vmem>>, vector<128x16xf32>,
    } else {
    }
    return
  }
  func.func @transform_0(%arg0: i32, %arg1: i32) -> (i32, i32) {
    %c0_i32 = arith.constant 0 : i32
    %c0_i32_0 = arith.constant 0 : i32
    return %arg0, %c0_i32 : i32, i32
  }
  func.func @transform_1(%arg0: i32, %arg1: i32) -> (i32, i32) {
    %c0_i32 = arith.constant 0 : i32
    %c0_i32_0 = arith.constant 0 : i32
    return %arg0, %c0_i32 : i32, i32
  }
  func.func @transform_2(%arg0: i32, %arg1: i32) -> (i32, i32) {
    %c0_i32 = arith.constant 0 : i32
    %c0_i32_0 = arith.constant 0 : i32
    return %arg1, %c0_i32 : i32, i32
  }
  func.func @transform_3(%arg0: i32, %arg1: i32) -> (i32, i32) {
    %c0_i32 = arith.constant 0 : i32
    %c0_i32_0 = arith.constant 0 : i32
    return %arg0, %c0_i32 : i32, i32
  }
}

</mosaic_0001>

<llo_original>
// kernel: tpu_custom_call.1
$region0: #{tpu_custom_call.1}
  #allocation0 [shape = 'u32[]', space=smem, size = 0x4, offset = 0x4, fixed_abs, tag = 'smem constant byte address 0x4 - core index']
  #allocation1 [shape = 'u32[144,128]{1,0:T(1,128)}', space=vmem, size = 0x12000, scoped, tag = 'internal scratch']
  #allocation2 [shape = 'f32[256,16]{1,0:T(8,128)}', space=vmem, size = 0x20000, scoped, tag = 'scratch operand']
  %s0 = inlined_call_operand.vmem [shape: s32[256,1], index: 0, kind: input, shape index: {}]
  %s1 = inlined_call_operand.vmem [shape: f32[128,16], index: 1, kind: input, shape index: {}]
  %s2 = inlined_call_operand.vmem [shape: f32[128,16], index: 2, kind: input, shape index: {}]
  %s3 = inlined_call_operand.vmem [shape: f32[128,32], index: 3, kind: output, shape index: {}]
  %s4 = sld [smem:[#allocation0]]
  $region30: #{tpu_custom_call.1} parent=0
    _
  %s6 = ssub.s32 1, %s4
  %s7 = scalar_select 0, %s6, %s4
  // Predicated region
  $region2: #{tpu_custom_call.1} parent=0 // pred_check
    _
  $region3: #{tpu_custom_call.1} parent=0 // pred_check_branch
    %9 = sbr.rel (0) target = $region5
  $region4: #{tpu_custom_call.1} parent=0 // pred_region
    _
  $region5: #{tpu_custom_call.1} parent=0 // pred_fallthru
    _
  // Predicated region
  $region6: #{tpu_custom_call.1} parent=0 // pred_check
    _
  $region7: #{tpu_custom_call.1} parent=0 // pred_check_branch
    %11 = sbr.rel (0) target = $region9
  $region8: #{tpu_custom_call.1} parent=0 // pred_region
    _
  $region9: #{tpu_custom_call.1} parent=0 // pred_fallthru
    _
  // Predicated region
  $region10: #{tpu_custom_call.1} parent=0 // pred_check
    _
  $region11: #{tpu_custom_call.1} parent=0 // pred_check_branch
    %13 = sbr.rel (0) target = $region13
  $region12: #{tpu_custom_call.1} parent=0 // pred_region
    _
  $region13: #{tpu_custom_call.1} parent=0 // pred_fallthru
    _
  %p14 = scmp.eq.s32.totalorder 0, 0
  // Predicated region
  $region14: #{tpu_custom_call.1} parent=0 // pred_check
    %p15 = pneg %p14
  $region15: #{tpu_custom_call.1} parent=0 // pred_check_branch
    %17 = sbr.rel (%p15) target = $region17
  $region16: #{tpu_custom_call.1} parent=0 // pred_region
    %vm18 = vcmask 130048
    %19 = vst.msk [vmem:[#allocation2] sm:$0xff] %vm18, 0.0
    %20 = vst.msk [vmem:[#allocation2 + $0x8] sm:$0xff] %vm18, 0.0
    %21 = vst.msk [vmem:[#allocation2 + $0x10] sm:$0xff] %vm18, 0.0
    %22 = vst.msk [vmem:[#allocation2 + $0x18] sm:$0xff] %vm18, 0.0
    %23 = vst.msk [vmem:[#allocation2 + $0x20] sm:$0xff] %vm18, 0.0
    %24 = vst.msk [vmem:[#allocation2 + $0x28] sm:$0xff] %vm18, 0.0
    %25 = vst.msk [vmem:[#allocation2 + $0x30] sm:$0xff] %vm18, 0.0
    %26 = vst.msk [vmem:[#allocation2 + $0x38] sm:$0xff] %vm18, 0.0
    %27 = vst.msk [vmem:[#allocation2 + $0x40] sm:$0xff] %vm18, 0.0
    %28 = vst.msk [vmem:[#allocation2 + $0x48] sm:$0xff] %vm18, 0.0
    %29 = vst.msk [vmem:[#allocation2 + $0x50] sm:$0xff] %vm18, 0.0
    %30 = vst.msk [vmem:[#allocation2 + $0x58] sm:$0xff] %vm18, 0.0
    %31 = vst.msk [vmem:[#allocation2 + $0x60] sm:$0xff] %vm18, 0.0
    %32 = vst.msk [vmem:[#allocation2 + $0x68] sm:$0xff] %vm18, 0.0
    %33 = vst.msk [vmem:[#allocation2 + $0x70] sm:$0xff] %vm18, 0.0
    %34 = vst.msk [vmem:[#allocation2 + $0x78] sm:$0xff] %vm18, 0.0
    %35 = vst.msk [vmem:[#allocation2 + $0x80] sm:$0xff] %vm18, 0.0
    %36 = vst.msk [vmem:[#allocation2 + $0x88] sm:$0xff] %vm18, 0.0
    %37 = vst.msk [vmem:[#allocation2 + $0x90] sm:$0xff] %vm18, 0.0
    %38 = vst.msk [vmem:[#allocation2 + $0x98] sm:$0xff] %vm18, 0.0
    %39 = vst.msk [vmem:[#allocation2 + $0xa0] sm:$0xff] %vm18, 0.0
    %40 = vst.msk [vmem:[#allocation2 + $0xa8] sm:$0xff] %vm18, 0.0
    %41 = vst.msk [vmem:[#allocation2 + $0xb0] sm:$0xff] %vm18, 0.0
    %42 = vst.msk [vmem:[#allocation2 + $0xb8] sm:$0xff] %vm18, 0.0
    %43 = vst.msk [vmem:[#allocation2 + $0xc0] sm:$0xff] %vm18, 0.0
    %44 = vst.msk [vmem:[#allocation2 + $0xc8] sm:$0xff] %vm18, 0.0
    %45 = vst.msk [vmem:[#allocation2 + $0xd0] sm:$0xff] %vm18, 0.0
    %46 = vst.msk [vmem:[#allocation2 + $0xd8] sm:$0xff] %vm18, 0.0
    %47 = vst.msk [vmem:[#allocation2 + $0xe0] sm:$0xff] %vm18, 0.0
    %48 = vst.msk [vmem:[#allocation2 + $0xe8] sm:$0xff] %vm18, 0.0
    %49 = vst.msk [vmem:[#allocation2 + $0xf0] sm:$0xff] %vm18, 0.0
    %50 = vst.msk [vmem:[#allocation2 + $0xf8] sm:$0xff] %vm18, 0.0
  $region17: #{tpu_custom_call.1} parent=0 // pred_fallthru
    _
  %v51 = vlaneseq
  %v52 = vand.u32 %v51, 127
  %s53 = smul.u32 0, 128
  %v54 = vstv %s53
  %v55 = vadd.s32 %v52, %v54
  %v56 = vld [vmem:[%s0] sm:$0xff]
  %v57 = vld [vmem:[%s0 + $0x8] sm:$0xff]
  %v58 = vld [vmem:[%s0 + $0x10] sm:$0xff]
  %v59 = vld [vmem:[%s0 + $0x18] sm:$0xff]
  %v60 = vld [vmem:[%s0 + $0x20] sm:$0xff]
  %v61 = vld [vmem:[%s0 + $0x28] sm:$0xff]
  %v62 = vld [vmem:[%s0 + $0x30] sm:$0xff]
  %v63 = vld [vmem:[%s0 + $0x38] sm:$0xff]
  %v64 = vld [vmem:[%s0 + $0x40] sm:$0xff]
  %v65 = vld [vmem:[%s0 + $0x48] sm:$0xff]
  %v66 = vld [vmem:[%s0 + $0x50] sm:$0xff]
  %v67 = vld [vmem:[%s0 + $0x58] sm:$0xff]
  %v68 = vld [vmem:[%s0 + $0x60] sm:$0xff]
  %v69 = vld [vmem:[%s0 + $0x68] sm:$0xff]
  %v70 = vld [vmem:[%s0 + $0x70] sm:$0xff]
  %v71 = vld [vmem:[%s0 + $0x78] sm:$0xff]
  %v72 = vld [vmem:[%s0 + $0x80] sm:$0xff]
  %v73 = vld [vmem:[%s0 + $0x88] sm:$0xff]
  %v74 = vld [vmem:[%s0 + $0x90] sm:$0xff]
  %v75 = vld [vmem:[%s0 + $0x98] sm:$0xff]
  %v76 = vld [vmem:[%s0 + $0xa0] sm:$0xff]
  %v77 = vld [vmem:[%s0 + $0xa8] sm:$0xff]
  %v78 = vld [vmem:[%s0 + $0xb0] sm:$0xff]
  %v79 = vld [vmem:[%s0 + $0xb8] sm:$0xff]
  %v80 = vld [vmem:[%s0 + $0xc0] sm:$0xff]
  %v81 = vld [vmem:[%s0 + $0xc8] sm:$0xff]
  %v82 = vld [vmem:[%s0 + $0xd0] sm:$0xff]
  %v83 = vld [vmem:[%s0 + $0xd8] sm:$0xff]
  %v84 = vld [vmem:[%s0 + $0xe0] sm:$0xff]
  %v85 = vld [vmem:[%s0 + $0xe8] sm:$0xff]
  %v86 = vld [vmem:[%s0 + $0xf0] sm:$0xff]
  %v87 = vld [vmem:[%s0 + $0xf8] sm:$0xff]
  %88 = vset.pattern.permute.xlu0 0
  %89 = vperm.xlu0 %88, %v56
  %v90 = vpop.permute.xlu0 %89
  %91 = vset.pattern.permute.xlu0 0
  %92 = vperm.xlu0 %91, %v57
  %v93 = vpop.permute.xlu0 %92
  %94 = vset.pattern.permute.xlu0 0
  %95 = vperm.xlu0 %94, %v58
  %v96 = vpop.permute.xlu0 %95
  %97 = vset.pattern.permute.xlu0 0
  %98 = vperm.xlu0 %97, %v59
  %v99 = vpop.permute.xlu0 %98
  %100 = vset.pattern.permute.xlu0 0
  %101 = vperm.xlu0 %100, %v60
  %v102 = vpop.permute.xlu0 %101
  %103 = vset.pattern.permute.xlu0 0
  %104 = vperm.xlu0 %103, %v61
  %v105 = vpop.permute.xlu0 %104
  %106 = vset.pattern.permute.xlu0 0
  %107 = vperm.xlu0 %106, %v62
  %v108 = vpop.permute.xlu0 %107
  %109 = vset.pattern.permute.xlu0 0
  %110 = vperm.xlu0 %109, %v63
  %v111 = vpop.permute.xlu0 %110
  %112 = vset.pattern.permute.xlu0 0
  %113 = vperm.xlu0 %112, %v64
  %v114 = vpop.permute.xlu0 %113
  %115 = vset.pattern.permute.xlu0 0
  %116 = vperm.xlu0 %115, %v65
  %v117 = vpop.permute.xlu0 %116
  %118 = vset.pattern.permute.xlu0 0
  %119 = vperm.xlu0 %118, %v66
  %v120 = vpop.permute.xlu0 %119
  %121 = vset.pattern.permute.xlu0 0
  %122 = vperm.xlu0 %121, %v67
  %v123 = vpop.permute.xlu0 %122
  %124 = vset.pattern.permute.xlu0 0
  %125 = vperm.xlu0 %124, %v68
  %v126 = vpop.permute.xlu0 %125
  %127 = vset.pattern.permute.xlu0 0
  %128 = vperm.xlu0 %127, %v69
  %v129 = vpop.permute.xlu0 %128
  %130 = vset.pattern.permute.xlu0 0
  %131 = vperm.xlu0 %130, %v70
  %v132 = vpop.permute.xlu0 %131
  %133 = vset.pattern.permute.xlu0 0
  %134 = vperm.xlu0 %133, %v71
  %v135 = vpop.permute.xlu0 %134
  %136 = vset.pattern.permute.xlu0 0
  %137 = vperm.xlu0 %136, %v72
  %v138 = vpop.permute.xlu0 %137
  %139 = vset.pattern.permute.xlu0 0
  %140 = vperm.xlu0 %139, %v73
  %v141 = vpop.permute.xlu0 %140
  %142 = vset.pattern.permute.xlu0 0
  %143 = vperm.xlu0 %142, %v74
  %v144 = vpop.permute.xlu0 %143
  %145 = vset.pattern.permute.xlu0 0
  %146 = vperm.xlu0 %145, %v75
  %v147 = vpop.permute.xlu0 %146
  %148 = vset.pattern.permute.xlu0 0
  %149 = vperm.xlu0 %148, %v76
  %v150 = vpop.permute.xlu0 %149
  %151 = vset.pattern.permute.xlu0 0
  %152 = vperm.xlu0 %151, %v77
  %v153 = vpop.permute.xlu0 %152
  %154 = vset.pattern.permute.xlu0 0
  %155 = vperm.xlu0 %154, %v78
  %v156 = vpop.permute.xlu0 %155
  %157 = vset.pattern.permute.xlu0 0
  %158 = vperm.xlu0 %157, %v79
  %v159 = vpop.permute.xlu0 %158
  %160 = vset.pattern.permute.xlu0 0
  %161 = vperm.xlu0 %160, %v80
  %v162 = vpop.permute.xlu0 %161
  %163 = vset.pattern.permute.xlu0 0
  %164 = vperm.xlu0 %163, %v81
  %v165 = vpop.permute.xlu0 %164
  %166 = vset.pattern.permute.xlu0 0
  %167 = vperm.xlu0 %166, %v82
  %v168 = vpop.permute.xlu0 %167
  %169 = vset.pattern.permute.xlu0 0
  %170 = vperm.xlu0 %169, %v83
  %v171 = vpop.permute.xlu0 %170
  %172 = vset.pattern.permute.xlu0 0
  %173 = vperm.xlu0 %172, %v84
  %v174 = vpop.permute.xlu0 %173
  %175 = vset.pattern.permute.xlu0 0
  %176 = vperm.xlu0 %175, %v85
  %v177 = vpop.permute.xlu0 %176
  %178 = vset.pattern.permute.xlu0 0
  %179 = vperm.xlu0 %178, %v86
  %v180 = vpop.permute.xlu0 %179
  %181 = vset.pattern.permute.xlu0 0
  %182 = vperm.xlu0 %181, %v87
  %v183 = vpop.permute.xlu0 %182
  %vm184 = vcmp.eq.s32.totalorder %v90, %v55
  %vm185 = vcmp.eq.s32.totalorder %v93, %v55
  %vm186 = vcmp.eq.s32.totalorder %v96, %v55
  %vm187 = vcmp.eq.s32.totalorder %v99, %v55
  %vm188 = vcmp.eq.s32.totalorder %v102, %v55
  %vm189 = vcmp.eq.s32.totalorder %v105, %v55
  %vm190 = vcmp.eq.s32.totalorder %v108, %v55
  %vm191 = vcmp.eq.s32.totalorder %v111, %v55
  %vm192 = vcmp.eq.s32.totalorder %v114, %v55
  %vm193 = vcmp.eq.s32.totalorder %v117, %v55
  %vm194 = vcmp.eq.s32.totalorder %v120, %v55
  %vm195 = vcmp.eq.s32.totalorder %v123, %v55
  %vm196 = vcmp.eq.s32.totalorder %v126, %v55
  %vm197 = vcmp.eq.s32.totalorder %v129, %v55
  %vm198 = vcmp.eq.s32.totalorder %v132, %v55
  %vm199 = vcmp.eq.s32.totalorder %v135, %v55
  %vm200 = vcmp.eq.s32.totalorder %v138, %v55
  %vm201 = vcmp.eq.s32.totalorder %v141, %v55
  %vm202 = vcmp.eq.s32.totalorder %v144, %v55
  %vm203 = vcmp.eq.s32.totalorder %v147, %v55
  %vm204 = vcmp.eq.s32.totalorder %v150, %v55
  %vm205 = vcmp.eq.s32.totalorder %v153, %v55
  %vm206 = vcmp.eq.s32.totalorder %v156, %v55
  %vm207 = vcmp.eq.s32.totalorder %v159, %v55
  %vm208 = vcmp.eq.s32.totalorder %v162, %v55
  %vm209 = vcmp.eq.s32.totalorder %v165, %v55
  %vm210 = vcmp.eq.s32.totalorder %v168, %v55
  %vm211 = vcmp.eq.s32.totalorder %v171, %v55
  %vm212 = vcmp.eq.s32.totalorder %v174, %v55
  %vm213 = vcmp.eq.s32.totalorder %v177, %v55
  %vm214 = vcmp.eq.s32.totalorder %v180, %v55
  %vm215 = vcmp.eq.s32.totalorder %v183, %v55
  %v216 = vsel %vm184, 1.0, 0.0
  %v217 = vsel %vm185, 1.0, 0.0
  %v218 = vsel %vm186, 1.0, 0.0
  %v219 = vsel %vm187, 1.0, 0.0
  %v220 = vsel %vm188, 1.0, 0.0
  %v221 = vsel %vm189, 1.0, 0.0
  %v222 = vsel %vm190, 1.0, 0.0
  %v223 = vsel %vm191, 1.0, 0.0
  %v224 = vsel %vm192, 1.0, 0.0
  %v225 = vsel %vm193, 1.0, 0.0
  %v226 = vsel %vm194, 1.0, 0.0
  %v227 = vsel %vm195, 1.0, 0.0
  %v228 = vsel %vm196, 1.0, 0.0
  %v229 = vsel %vm197, 1.0, 0.0
  %v230 = vsel %vm198, 1.0, 0.0
  %v231 = vsel %vm199, 1.0, 0.0
  %v232 = vsel %vm200, 1.0, 0.0
  %v233 = vsel %vm201, 1.0, 0.0
  %v234 = vsel %vm202, 1.0, 0.0
  %v235 = vsel %vm203, 1.0, 0.0
  %v236 = vsel %vm204, 1.0, 0.0
  %v237 = vsel %vm205, 1.0, 0.0
  %v238 = vsel %vm206, 1.0, 0.0
  %v239 = vsel %vm207, 1.0, 0.0
  %v240 = vsel %vm208, 1.0, 0.0
  %v241 = vsel %vm209, 1.0, 0.0
  %v242 = vsel %vm210, 1.0, 0.0
  %v243 = vsel %vm211, 1.0, 0.0
  %v244 = vsel %vm212, 1.0, 0.0
  %v245 = vsel %vm213, 1.0, 0.0
  %v246 = vsel %vm214, 1.0, 0.0
  %v247 = vsel %vm215, 1.0, 0.0
  %v248 = vld [vmem:[#allocation2] sm:$0xff]
  %v249 = vld [vmem:[#allocation2 + $0x8] sm:$0xff]
  %v250 = vld [vmem:[#allocation2 + $0x10] sm:$0xff]
  %v251 = vld [vmem:[#allocation2 + $0x18] sm:$0xff]
  %v252 = vld [vmem:[#allocation2 + $0x20] sm:$0xff]
  %v253 = vld [vmem:[#allocation2 + $0x28] sm:$0xff]
  %v254 = vld [vmem:[#allocation2 + $0x30] sm:$0xff]
  %v255 = vld [vmem:[#allocation2 + $0x38] sm:$0xff]
  %v256 = vld [vmem:[#allocation2 + $0x40] sm:$0xff]
  %v257 = vld [vmem:[#allocation2 + $0x48] sm:$0xff]
  %v258 = vld [vmem:[#allocation2 + $0x50] sm:$0xff]
  %v259 = vld [vmem:[#allocation2 + $0x58] sm:$0xff]
  %v260 = vld [vmem:[#allocation2 + $0x60] sm:$0xff]
  %v261 = vld [vmem:[#allocation2 + $0x68] sm:$0xff]
  %v262 = vld [vmem:[#allocation2 + $0x70] sm:$0xff]
  %v263 = vld [vmem:[#allocation2 + $0x78] sm:$0xff]
  %v264 = vld [vmem:[#allocation2 + $0x80] sm:$0xff]
  %v265 = vld [vmem:[#allocation2 + $0x88] sm:$0xff]
  %v266 = vld [vmem:[#allocation2 + $0x90] sm:$0xff]
  %v267 = vld [vmem:[#allocation2 + $0x98] sm:$0xff]
  %v268 = vld [vmem:[#allocation2 + $0xa0] sm:$0xff]
  %v269 = vld [vmem:[#allocation2 + $0xa8] sm:$0xff]
  %v270 = vld [vmem:[#allocation2 + $0xb0] sm:$0xff]
  %v271 = vld [vmem:[#allocation2 + $0xb8] sm:$0xff]
  %v272 = vld [vmem:[#allocation2 + $0xc0] sm:$0xff]
  %v273 = vld [vmem:[#allocation2 + $0xc8] sm:$0xff]
  %v274 = vld [vmem:[#allocation2 + $0xd0] sm:$0xff]
  %v275 = vld [vmem:[#allocation2 + $0xd8] sm:$0xff]
  %v276 = vld [vmem:[#allocation2 + $0xe0] sm:$0xff]
  %v277 = vld [vmem:[#allocation2 + $0xe8] sm:$0xff]
  %v278 = vld [vmem:[#allocation2 + $0xf0] sm:$0xff]
  %v279 = vld [vmem:[#allocation2 + $0xf8] sm:$0xff]
  %v280 = vld [vmem:[%s2] sm:$0xff]
  %v281 = vld [vmem:[%s2 + $0x8] sm:$0xff]
  %v282 = vld [vmem:[%s2 + $0x10] sm:$0xff]
  %v283 = vld [vmem:[%s2 + $0x18] sm:$0xff]
  %v284 = vld [vmem:[%s2 + $0x20] sm:$0xff]
  %v285 = vld [vmem:[%s2 + $0x28] sm:$0xff]
  %v286 = vld [vmem:[%s2 + $0x30] sm:$0xff]
  %v287 = vld [vmem:[%s2 + $0x38] sm:$0xff]
  %v288 = vld [vmem:[%s2 + $0x40] sm:$0xff]
  %v289 = vld [vmem:[%s2 + $0x48] sm:$0xff]
  %v290 = vld [vmem:[%s2 + $0x50] sm:$0xff]
  %v291 = vld [vmem:[%s2 + $0x58] sm:$0xff]
  %v292 = vld [vmem:[%s2 + $0x60] sm:$0xff]
  %v293 = vld [vmem:[%s2 + $0x68] sm:$0xff]
  %v294 = vld [vmem:[%s2 + $0x70] sm:$0xff]
  %v295 = vld [vmem:[%s2 + $0x78] sm:$0xff]
  %296 = vmatprep.subr.mxu0 0.0
  %297 = vmatpush1.msra.mxu0 %v280
  %298 = vmatprep.subr.mxu0 0.0
  %299 = vmatpush1.msra.mxu0 %v281
  %300 = vmatprep.subr.mxu0 0.0
  %301 = vmatpush1.msra.mxu0 %v282
  %302 = vmatprep.subr.mxu0 0.0
  %303 = vmatpush1.msra.mxu0 %v283
  %304 = vmatprep.subr.mxu0 0.0
  %305 = vmatpush1.msra.mxu0 %v284
  %306 = vmatprep.subr.mxu0 0.0
  %307 = vmatpush1.msra.mxu0 %v285
  %308 = vmatprep.subr.mxu0 0.0
  %309 = vmatpush1.msra.mxu0 %v286
  %310 = vmatprep.subr.mxu0 0.0
  %311 = vmatpush1.msra.mxu0 %v287
  %312 = vmatprep.subr.mxu0 0.0
  %313 = vmatpush1.msra.mxu0 %v288
  %314 = vmatprep.subr.mxu0 0.0
  %315 = vmatpush1.msra.mxu0 %v289
  %316 = vmatprep.subr.mxu0 0.0
  %317 = vmatpush1.msra.mxu0 %v290
  %318 = vmatprep.subr.mxu0 0.0
  %319 = vmatpush1.msra.mxu0 %v291
  %320 = vmatprep.subr.mxu0 0.0
  %321 = vmatpush1.msra.mxu0 %v292
  %322 = vmatprep.subr.mxu0 0.0
  %323 = vmatpush1.msra.mxu0 %v293
  %324 = vmatprep.subr.mxu0 0.0
  %325 = vmatpush1.msra.mxu0 %v294
  %326 = vmatprep.subr.mxu0 0.0
  %327 = vmatpush1.msra.mxu0 %v295
  %328 = vmatprep.subr.mxu0 0.0
  %329 = vmatpush1.msra.mxu0 0.0
  %330 = vmatprep.subr.mxu0 0.0
  %331 = vmatpush1.msra.mxu0 0.0
  %332 = vmatprep.subr.mxu0 0.0
  %333 = vmatpush1.msra.mxu0 0.0
  %334 = vmatprep.subr.mxu0 0.0
  %335 = vmatpush1.msra.mxu0 0.0
  %336 = vmatprep.subr.mxu0 0.0
  %337 = vmatpush1.msra.mxu0 0.0
  %338 = vmatprep.subr.mxu0 0.0
  %339 = vmatpush1.msra.mxu0 0.0
  %340 = vmatprep.subr.mxu0 0.0
  %341 = vmatpush1.msra.mxu0 0.0
  %342 = vmatprep.subr.mxu0 0.0
  %343 = vmatpush1.msra.mxu0 0.0
  %344 = vmatprep.subr.mxu0 0.0
  %345 = vmatpush1.msra.mxu0 0.0
  %346 = vmatprep.subr.mxu0 0.0
  %347 = vmatpush1.msra.mxu0 0.0
  %348 = vmatprep.subr.mxu0 0.0
  %349 = vmatpush1.msra.mxu0 0.0
  %350 = vmatprep.subr.mxu0 0.0
  %351 = vmatpush1.msra.mxu0 0.0
  %352 = vmatprep.subr.mxu0 0.0
  %353 = vmatpush1.msra.mxu0 0.0
  %354 = vmatprep.subr.mxu0 0.0
  %355 = vmatpush1.msra.mxu0 0.0
  %356 = vmatprep.subr.mxu0 0.0
  %357 = vmatpush1.msra.mxu0 0.0
  %358 = vmatprep.subr.mxu0 0.0
  %359 = vmatpush1.msra.mxu0 0.0
  %360 = vmatprep.mubr.f32.mxu0 0.0
  %361 = vmatmul.mubr.f32.gmra.mrb[0].mxu0 %v216
  %v362 = vpop.f32.mrb[0].mxu0
  %v363 = vadd.f32 0.0, %v362
  %v364 = vpop.f32.mrb[0].mxu0
  %365 = vmatprep.mubr.f32.mxu0 0.0
  %366 = vmatmul.mubr.f32.gmra.mrb[0].mxu0 %v217
  %v367 = vpop.f32.mrb[0].mxu0
  %v368 = vadd.f32 0.0, %v367
  %v369 = vpop.f32.mrb[0].mxu0
  %370 = vmatprep.mubr.f32.mxu0 0.0
  %371 = vmatmul.mubr.f32.gmra.mrb[0].mxu0 %v218
  %v372 = vpop.f32.mrb[0].mxu0
  %v373 = vadd.f32 0.0, %v372
  %v374 = vpop.f32.mrb[0].mxu0
  %375 = vmatprep.mubr.f32.mxu0 0.0
  %376 = vmatmul.mubr.f32.gmra.mrb[0].mxu0 %v219
  %v377 = vpop.f32.mrb[0].mxu0
  %v378 = vadd.f32 0.0, %v377
  %v379 = vpop.f32.mrb[0].mxu0
  %380 = vmatprep.mubr.f32.mxu0 0.0
  %381 = vmatmul.mubr.f32.gmra.mrb[0].mxu0 %v220
  %v382 = vpop.f32.mrb[0].mxu0
  %v383 = vadd.f32 0.0, %v382
  %v384 = vpop.f32.mrb[0].mxu0
  %385 = vmatprep.mubr.f32.mxu0 0.0
  %386 = vmatmul.mubr.f32.gmra.mrb[0].mxu0 %v221
  %v387 = vpop.f32.mrb[0].mxu0
  %v388 = vadd.f32 0.0, %v387
  %v389 = vpop.f32.mrb[0].mxu0
  %390 = vmatprep.mubr.f32.mxu0 0.0
  %391 = vmatmul.mubr.f32.gmra.mrb[0].mxu0 %v222
  %v392 = vpop.f32.mrb[0].mxu0
  %v393 = vadd.f32 0.0, %v392
  %v394 = vpop.f32.mrb[0].mxu0
  %395 = vmatprep.mubr.f32.mxu0 0.0
  %396 = vmatmul.mubr.f32.gmra.mrb[0].mxu0 %v223
  %v397 = vpop.f32.mrb[0].mxu0
  %v398 = vadd.f32 0.0, %v397
  %v399 = vpop.f32.mrb[0].mxu0
  %400 = vmatprep.mubr.f32.mxu0 0.0
  %401 = vmatmul.mubr.f32.gmra.mrb[0].mxu0 %v224
  %v402 = vpop.f32.mrb[0].mxu0
  %v403 = vadd.f32 0.0, %v402
  %v404 = vpop.f32.mrb[0].mxu0
  %405 = vmatprep.mubr.f32.mxu0 0.0
  %406 = vmatmul.mubr.f32.gmra.mrb[0].mxu0 %v225
  %v407 = vpop.f32.mrb[0].mxu0
  %v408 = vadd.f32 0.0, %v407
  %v409 = vpop.f32.mrb[0].mxu0
  %410 = vmatprep.mubr.f32.mxu0 0.0
  %411 = vmatmul.mubr.f32.gmra.mrb[0].mxu0 %v226
  %v412 = vpop.f32.mrb[0].mxu0
  %v413 = vadd.f32 0.0, %v412
  %v414 = vpop.f32.mrb[0].mxu0
  %415 = vmatprep.mubr.f32.mxu0 0.0
  %416 = vmatmul.mubr.f32.gmra.mrb[0].mxu0 %v227
  %v417 = vpop.f32.mrb[0].mxu0
  %v418 = vadd.f32 0.0, %v417
  %v419 = vpop.f32.mrb[0].mxu0
  %420 = vmatprep.mubr.f32.mxu0 0.0
  %421 = vmatmul.mubr.f32.gmra.mrb[0].mxu0 %v228
  %v422 = vpop.f32.mrb[0].mxu0
  %v423 = vadd.f32 0.0, %v422
  %v424 = vpop.f32.mrb[0].mxu0
  %425 = vmatprep.mubr.f32.mxu0 0.0
  %426 = vmatmul.mubr.f32.gmra.mrb[0].mxu0 %v229
  %v427 = vpop.f32.mrb[0].mxu0
  %v428 = vadd.f32 0.0, %v427
  %v429 = vpop.f32.mrb[0].mxu0
  %430 = vmatprep.mubr.f32.mxu0 0.0
  %431 = vmatmul.mubr.f32.gmra.mrb[0].mxu0 %v230
  %v432 = vpop.f32.mrb[0].mxu0
  %v433 = vadd.f32 0.0, %v432
  %v434 = vpop.f32.mrb[0].mxu0
  %435 = vmatprep.mubr.f32.mxu0 0.0
  %436 = vmatmul.mubr.f32.gmra.mrb[0].mxu0 %v231
  %v437 = vpop.f32.mrb[0].mxu0
  %v438 = vadd.f32 0.0, %v437
  %v439 = vpop.f32.mrb[0].mxu0
  %440 = vmatprep.mubr.f32.mxu0 0.0
  %441 = vmatmul.mubr.f32.gmra.mrb[0].mxu0 %v232
  %v442 = vpop.f32.mrb[0].mxu0
  %v443 = vadd.f32 0.0, %v442
  %v444 = vpop.f32.mrb[0].mxu0
  %445 = vmatprep.mubr.f32.mxu0 0.0
  %446 = vmatmul.mubr.f32.gmra.mrb[0].mxu0 %v233
  %v447 = vpop.f32.mrb[0].mxu0
  %v448 = vadd.f32 0.0, %v447
  %v449 = vpop.f32.mrb[0].mxu0
  %450 = vmatprep.mubr.f32.mxu0 0.0
  %451 = vmatmul.mubr.f32.gmra.mrb[0].mxu0 %v234
  %v452 = vpop.f32.mrb[0].mxu0
  %v453 = vadd.f32 0.0, %v452
  %v454 = vpop.f32.mrb[0].mxu0
  %455 = vmatprep.mubr.f32.mxu0 0.0
  %456 = vmatmul.mubr.f32.gmra.mrb[0].mxu0 %v235
  %v457 = vpop.f32.mrb[0].mxu0
  %v458 = vadd.f32 0.0, %v457
  %v459 = vpop.f32.mrb[0].mxu0
  %460 = vmatprep.mubr.f32.mxu0 0.0
  %461 = vmatmul.mubr.f32.gmra.mrb[0].mxu0 %v236
  %v462 = vpop.f32.mrb[0].mxu0
  %v463 = vadd.f32 0.0, %v462
  %v464 = vpop.f32.mrb[0].mxu0
  %465 = vmatprep.mubr.f32.mxu0 0.0
  %466 = vmatmul.mubr.f32.gmra.mrb[0].mxu0 %v237
  %v467 = vpop.f32.mrb[0].mxu0
  %v468 = vadd.f32 0.0, %v467
  %v469 = vpop.f32.mrb[0].mxu0
  %470 = vmatprep.mubr.f32.mxu0 0.0
  %471 = vmatmul.mubr.f32.gmra.mrb[0].mxu0 %v238
  %v472 = vpop.f32.mrb[0].mxu0
  %v473 = vadd.f32 0.0, %v472
  %v474 = vpop.f32.mrb[0].mxu0
  %475 = vmatprep.mubr.f32.mxu0 0.0
  %476 = vmatmul.mubr.f32.gmra.mrb[0].mxu0 %v239
  %v477 = vpop.f32.mrb[0].mxu0
  %v478 = vadd.f32 0.0, %v477
  %v479 = vpop.f32.mrb[0].mxu0
  %480 = vmatprep.mubr.f32.mxu0 0.0
  %481 = vmatmul.mubr.f32.gmra.mrb[0].mxu0 %v240
  %v482 = vpop.f32.mrb[0].mxu0
  %v483 = vadd.f32 0.0, %v482
  %v484 = vpop.f32.mrb[0].mxu0
  %485 = vmatprep.mubr.f32.mxu0 0.0
  %486 = vmatmul.mubr.f32.gmra.mrb[0].mxu0 %v241
  %v487 = vpop.f32.mrb[0].mxu0
  %v488 = vadd.f32 0.0, %v487
  %v489 = vpop.f32.mrb[0].mxu0
  %490 = vmatprep.mubr.f32.mxu0 0.0
  %491 = vmatmul.mubr.f32.gmra.mrb[0].mxu0 %v242
  %v492 = vpop.f32.mrb[0].mxu0
  %v493 = vadd.f32 0.0, %v492
  %v494 = vpop.f32.mrb[0].mxu0
  %495 = vmatprep.mubr.f32.mxu0 0.0
  %496 = vmatmul.mubr.f32.gmra.mrb[0].mxu0 %v243
  %v497 = vpop.f32.mrb[0].mxu0
  %v498 = vadd.f32 0.0, %v497
  %v499 = vpop.f32.mrb[0].mxu0
  %500 = vmatprep.mubr.f32.mxu0 0.0
  %501 = vmatmul.mubr.f32.gmra.mrb[0].mxu0 %v244
  %v502 = vpop.f32.mrb[0].mxu0
  %v503 = vadd.f32 0.0, %v502
  %v504 = vpop.f32.mrb[0].mxu0
  %505 = vmatprep.mubr.f32.mxu0 0.0
  %506 = vmatmul.mubr.f32.gmra.mrb[0].mxu0 %v245
  %v507 = vpop.f32.mrb[0].mxu0
  %v508 = vadd.f32 0.0, %v507
  %v509 = vpop.f32.mrb[0].mxu0
  %510 = vmatprep.mubr.f32.mxu0 0.0
  %511 = vmatmul.mubr.f32.gmra.mrb[0].mxu0 %v246
  %v512 = vpop.f32.mrb[0].mxu0
  %v513 = vadd.f32 0.0, %v512
  %v514 = vpop.f32.mrb[0].mxu0
  %515 = vmatprep.mubr.f32.mxu0 0.0
  %516 = vmatmul.mubr.f32.gmra.mrb[0].mxu0 %v247
  %v517 = vpop.f32.mrb[0].mxu0
  %v518 = vadd.f32 0.0, %v517
  %v519 = vpop.f32.mrb[0].mxu0
  %520 = vdwg.mxu0
  %v521 = vadd.f32 %v248, %v363
  %v522 = vadd.f32 %v249, %v368
  %v523 = vadd.f32 %v250, %v373
  %v524 = vadd.f32 %v251, %v378
  %v525 = vadd.f32 %v252, %v383
  %v526 = vadd.f32 %v253, %v388
  %v527 = vadd.f32 %v254, %v393
  %v528 = vadd.f32 %v255, %v398
  %v529 = vadd.f32 %v256, %v403
  %v530 = vadd.f32 %v257, %v408
  %v531 = vadd.f32 %v258, %v413
  %v532 = vadd.f32 %v259, %v418
  %v533 = vadd.f32 %v260, %v423
  %v534 = vadd.f32 %v261, %v428
  %v535 = vadd.f32 %v262, %v433
  %v536 = vadd.f32 %v263, %v438
  %v537 = vadd.f32 %v264, %v443
  %v538 = vadd.f32 %v265, %v448
  %v539 = vadd.f32 %v266, %v453
  %v540 = vadd.f32 %v267, %v458
  %v541 = vadd.f32 %v268, %v463
  %v542 = vadd.f32 %v269, %v468
  %v543 = vadd.f32 %v270, %v473
  %v544 = vadd.f32 %v271, %v478
  %v545 = vadd.f32 %v272, %v483
  %v546 = vadd.f32 %v273, %v488
  %v547 = vadd.f32 %v274, %v493
  %v548 = vadd.f32 %v275, %v498
  %v549 = vadd.f32 %v276, %v503
  %v550 = vadd.f32 %v277, %v508
  %v551 = vadd.f32 %v278, %v513
  %v552 = vadd.f32 %v279, %v518
  %vm553 = vcmask 130048
  %554 = vst.msk [vmem:[#allocation2] sm:$0xff] %vm553, %v521
  %555 = vst.msk [vmem:[#allocation2 + $0x8] sm:$0xff] %vm553, %v522
  %556 = vst.msk [vmem:[#allocation2 + $0x10] sm:$0xff] %vm553, %v523
  %557 = vst.msk [vmem:[#allocation2 + $0x18] sm:$0xff] %vm553, %v524
  %558 = vst.msk [vmem:[#allocation2 + $0x20] sm:$0xff] %vm553, %v525
  %559 = vst.msk [vmem:[#allocation2 + $0x28] sm:$0xff] %vm553, %v526
  %560 = vst.msk [vmem:[#allocation2 + $0x30] sm:$0xff] %vm553, %v527
  %561 = vst.msk [vmem:[#allocation2 + $0x38] sm:$0xff] %vm553, %v528
  %562 = vst.msk [vmem:[#allocation2 + $0x40] sm:$0xff] %vm553, %v529
  %563 = vst.msk [vmem:[#allocation2 + $0x48] sm:$0xff] %vm553, %v530
  %564 = vst.msk [vmem:[#allocation2 + $0x50] sm:$0xff] %vm553, %v531
  %565 = vst.msk [vmem:[#allocation2 + $0x58] sm:$0xff] %vm553, %v532
  %566 = vst.msk [vmem:[#allocation2 + $0x60] sm:$0xff] %vm553, %v533
  %567 = vst.msk [vmem:[#allocation2 + $0x68] sm:$0xff] %vm553, %v534
  %568 = vst.msk [vmem:[#allocation2 + $0x70] sm:$0xff] %vm553, %v535
  %569 = vst.msk [vmem:[#allocation2 + $0x78] sm:$0xff] %vm553, %v536
  %570 = vst.msk [vmem:[#allocation2 + $0x80] sm:$0xff] %vm553, %v537
  %571 = vst.msk [vmem:[#allocation2 + $0x88] sm:$0xff] %vm553, %v538
  %572 = vst.msk [vmem:[#allocation2 + $0x90] sm:$0xff] %vm553, %v539
  %573 = vst.msk [vmem:[#allocation2 + $0x98] sm:$0xff] %vm553, %v540
  %574 = vst.msk [vmem:[#allocation2 + $0xa0] sm:$0xff] %vm553, %v541
  %575 = vst.msk [vmem:[#allocation2 + $0xa8] sm:$0xff] %vm553, %v542
  %576 = vst.msk [vmem:[#allocation2 + $0xb0] sm:$0xff] %vm553, %v543
  %577 = vst.msk [vmem:[#allocation2 + $0xb8] sm:$0xff] %vm553, %v544
  %578 = vst.msk [vmem:[#allocation2 + $0xc0] sm:$0xff] %vm553, %v545
  %579 = vst.msk [vmem:[#allocation2 + $0xc8] sm:$0xff] %vm553, %v546
  %580 = vst.msk [vmem:[#allocation2 + $0xd0] sm:$0xff] %vm553, %v547
  %581 = vst.msk [vmem:[#allocation2 + $0xd8] sm:$0xff] %vm553, %v548
  %582 = vst.msk [vmem:[#allocation2 + $0xe0] sm:$0xff] %vm553, %v549
  %583 = vst.msk [vmem:[#allocation2 + $0xe8] sm:$0xff] %vm553, %v550
  %584 = vst.msk [vmem:[#allocation2 + $0xf0] sm:$0xff] %vm553, %v551
  %585 = vst.msk [vmem:[#allocation2 + $0xf8] sm:$0xff] %vm553, %v552
  // Predicated region
  $region18: #{tpu_custom_call.1} parent=0 // pred_check
    %p586 = pneg %p14
  $region19: #{tpu_custom_call.1} parent=0 // pred_check_branch
    %588 = sbr.rel (%p586) target = $region21
  $region20: #{tpu_custom_call.1} parent=0 // pred_region
    %v589 = vld [vmem:[%s1] sm:$0xff]
    %v590 = vld [vmem:[%s1 + $0x8] sm:$0xff]
    %v591 = vld [vmem:[%s1 + $0x10] sm:$0xff]
    %v592 = vld [vmem:[%s1 + $0x18] sm:$0xff]
    %v593 = vld [vmem:[%s1 + $0x20] sm:$0xff]
    %v594 = vld [vmem:[%s1 + $0x28] sm:$0xff]
    %v595 = vld [vmem:[%s1 + $0x30] sm:$0xff]
    %v596 = vld [vmem:[%s1 + $0x38] sm:$0xff]
    %v597 = vld [vmem:[%s1 + $0x40] sm:$0xff]
    %v598 = vld [vmem:[%s1 + $0x48] sm:$0xff]
    %v599 = vld [vmem:[%s1 + $0x50] sm:$0xff]
    %v600 = vld [vmem:[%s1 + $0x58] sm:$0xff]
    %v601 = vld [vmem:[%s1 + $0x60] sm:$0xff]
    %v602 = vld [vmem:[%s1 + $0x68] sm:$0xff]
    %v603 = vld [vmem:[%s1 + $0x70] sm:$0xff]
    %v604 = vld [vmem:[%s1 + $0x78] sm:$0xff]
    %v605 = vld [vmem:[#allocation2] sm:$0xff]
    %v606 = vld [vmem:[#allocation2 + $0x8] sm:$0xff]
    %v607 = vld [vmem:[#allocation2 + $0x10] sm:$0xff]
    %v608 = vld [vmem:[#allocation2 + $0x18] sm:$0xff]
    %v609 = vld [vmem:[#allocation2 + $0x20] sm:$0xff]
    %v610 = vld [vmem:[#allocation2 + $0x28] sm:$0xff]
    %v611 = vld [vmem:[#allocation2 + $0x30] sm:$0xff]
    %v612 = vld [vmem:[#allocation2 + $0x38] sm:$0xff]
    %v613 = vld [vmem:[#allocation2 + $0x40] sm:$0xff]
    %v614 = vld [vmem:[#allocation2 + $0x48] sm:$0xff]
    %v615 = vld [vmem:[#allocation2 + $0x50] sm:$0xff]
    %v616 = vld [vmem:[#allocation2 + $0x58] sm:$0xff]
    %v617 = vld [vmem:[#allocation2 + $0x60] sm:$0xff]
    %v618 = vld [vmem:[#allocation2 + $0x68] sm:$0xff]
    %v619 = vld [vmem:[#allocation2 + $0x70] sm:$0xff]
    %v620 = vld [vmem:[#allocation2 + $0x78] sm:$0xff]
    %v621 = vadd.f32 %v605, %v589
    %v622 = vadd.f32 %v606, %v590
    %v623 = vadd.f32 %v607, %v591
    %v624 = vadd.f32 %v608, %v592
    %v625 = vadd.f32 %v609, %v593
    %v626 = vadd.f32 %v610, %v594
    %v627 = vadd.f32 %v611, %v595
    %v628 = vadd.f32 %v612, %v596
    %v629 = vadd.f32 %v613, %v597
    %v630 = vadd.f32 %v614, %v598
    %v631 = vadd.f32 %v615, %v599
    %v632 = vadd.f32 %v616, %v600
    %v633 = vadd.f32 %v617, %v601
    %v634 = vadd.f32 %v618, %v602
    %v635 = vadd.f32 %v619, %v603
    %v636 = vadd.f32 %v620, %v604
    %v637 = vmul.f32 %v621, 0.5
    %v638 = vmul.f32 %v622, 0.5
    %v639 = vmul.f32 %v623, 0.5
    %v640 = vmul.f32 %v624, 0.5
    %v641 = vmul.f32 %v625, 0.5
    %v642 = vmul.f32 %v626, 0.5
    %v643 = vmul.f32 %v627, 0.5
    %v644 = vmul.f32 %v628, 0.5
    %v645 = vmul.f32 %v629, 0.5
    %v646 = vmul.f32 %v630, 0.5
    %v647 = vmul.f32 %v631, 0.5
    %v648 = vmul.f32 %v632, 0.5
    %v649 = vmul.f32 %v633, 0.5
    %v650 = vmul.f32 %v634, 0.5
    %v651 = vmul.f32 %v635, 0.5
    %v652 = vmul.f32 %v636, 0.5
    %653 = vst.msk [vmem:[%s3] sm:$0xff] %vm553, %v637
    %654 = vst.msk [vmem:[%s3 + $0x8] sm:$0xff] %vm553, %v638
    %655 = vst.msk [vmem:[%s3 + $0x10] sm:$0xff] %vm553, %v639
    %656 = vst.msk [vmem:[%s3 + $0x18] sm:$0xff] %vm553, %v640
    %657 = vst.msk [vmem:[%s3 + $0x20] sm:$0xff] %vm553, %v641
    %658 = vst.msk [vmem:[%s3 + $0x28] sm:$0xff] %vm553, %v642
    %659 = vst.msk [vmem:[%s3 + $0x30] sm:$0xff] %vm553, %v643
    %660 = vst.msk [vmem:[%s3 + $0x38] sm:$0xff] %vm553, %v644
    %661 = vst.msk [vmem:[%s3 + $0x40] sm:$0xff] %vm553, %v645
    %662 = vst.msk [vmem:[%s3 + $0x48] sm:$0xff] %vm553, %v646
    %663 = vst.msk [vmem:[%s3 + $0x50] sm:$0xff] %vm553, %v647
    %664 = vst.msk [vmem:[%s3 + $0x58] sm:$0xff] %vm553, %v648
    %665 = vst.msk [vmem:[%s3 + $0x60] sm:$0xff] %vm553, %v649
    %666 = vst.msk [vmem:[%s3 + $0x68] sm:$0xff] %vm553, %v650
    %667 = vst.msk [vmem:[%s3 + $0x70] sm:$0xff] %vm553, %v651
    %668 = vst.msk [vmem:[%s3 + $0x78] sm:$0xff] %vm553, %v652
    %v669 = vld [vmem:[#allocation2 + $0x80] sm:$0xff]
    %v670 = vld [vmem:[#allocation2 + $0x88] sm:$0xff]
    %v671 = vld [vmem:[#allocation2 + $0x90] sm:$0xff]
    %v672 = vld [vmem:[#allocation2 + $0x98] sm:$0xff]
    %v673 = vld [vmem:[#allocation2 + $0xa0] sm:$0xff]
    %v674 = vld [vmem:[#allocation2 + $0xa8] sm:$0xff]
    %v675 = vld [vmem:[#allocation2 + $0xb0] sm:$0xff]
    %v676 = vld [vmem:[#allocation2 + $0xb8] sm:$0xff]
    %v677 = vld [vmem:[#allocation2 + $0xc0] sm:$0xff]
    %v678 = vld [vmem:[#allocation2 + $0xc8] sm:$0xff]
    %v679 = vld [vmem:[#allocation2 + $0xd0] sm:$0xff]
    %v680 = vld [vmem:[#allocation2 + $0xd8] sm:$0xff]
    %v681 = vld [vmem:[#allocation2 + $0xe0] sm:$0xff]
    %v682 = vld [vmem:[#allocation2 + $0xe8] sm:$0xff]
    %v683 = vld [vmem:[#allocation2 + $0xf0] sm:$0xff]
    %v684 = vld [vmem:[#allocation2 + $0xf8] sm:$0xff]
    %v685 = vadd.f32 %v669, %v589
    %v686 = vadd.f32 %v670, %v590
    %v687 = vadd.f32 %v671, %v591
    %v688 = vadd.f32 %v672, %v592
    %v689 = vadd.f32 %v673, %v593
    %v690 = vadd.f32 %v674, %v594
    %v691 = vadd.f32 %v675, %v595
    %v692 = vadd.f32 %v676, %v596
    %v693 = vadd.f32 %v677, %v597
    %v694 = vadd.f32 %v678, %v598
    %v695 = vadd.f32 %v679, %v599
    %v696 = vadd.f32 %v680, %v600
    %v697 = vadd.f32 %v681, %v601
    %v698 = vadd.f32 %v682, %v602
    %v699 = vadd.f32 %v683, %v603
    %v700 = vadd.f32 %v684, %v604
    %v701 = vmul.f32 %v685, 0.5
    %v702 = vmul.f32 %v686, 0.5
    %v703 = vmul.f32 %v687, 0.5
    %v704 = vmul.f32 %v688, 0.5
    %v705 = vmul.f32 %v689, 0.5
    %v706 = vmul.f32 %v690, 0.5
    %v707 = vmul.f32 %v691, 0.5
    %v708 = vmul.f32 %v692, 0.5
    %v709 = vmul.f32 %v693, 0.5
    %v710 = vmul.f32 %v694, 0.5
    %v711 = vmul.f32 %v695, 0.5
    %v712 = vmul.f32 %v696, 0.5
    %v713 = vmul.f32 %v697, 0.5
    %v714 = vmul.f32 %v698, 0.5
    %v715 = vmul.f32 %v699, 0.5
    %v716 = vmul.f32 %v700, 0.5
    %733 = vrot.lane.b32.xlu0 %v701, 16
    %v734 = vpop.permute.xlu0 %733
    %735 = vrot.lane.b32.xlu0 %v702, 16
    %v736 = vpop.permute.xlu0 %735
    %737 = vrot.lane.b32.xlu0 %v703, 16
    %v738 = vpop.permute.xlu0 %737
    %739 = vrot.lane.b32.xlu0 %v704, 16
    %v740 = vpop.permute.xlu0 %739
    %741 = vrot.lane.b32.xlu0 %v705, 16
    %v742 = vpop.permute.xlu0 %741
    %743 = vrot.lane.b32.xlu0 %v706, 16
    %v744 = vpop.permute.xlu0 %743
    %745 = vrot.lane.b32.xlu0 %v707, 16
    %v746 = vpop.permute.xlu0 %745
    %747 = vrot.lane.b32.xlu0 %v708, 16
    %v748 = vpop.permute.xlu0 %747
    %749 = vrot.lane.b32.xlu0 %v709, 16
    %v750 = vpop.permute.xlu0 %749
    %751 = vrot.lane.b32.xlu0 %v710, 16
    %v752 = vpop.permute.xlu0 %751
    %753 = vrot.lane.b32.xlu0 %v711, 16
    %v754 = vpop.permute.xlu0 %753
    %755 = vrot.lane.b32.xlu0 %v712, 16
    %v756 = vpop.permute.xlu0 %755
    %757 = vrot.lane.b32.xlu0 %v713, 16
    %v758 = vpop.permute.xlu0 %757
    %759 = vrot.lane.b32.xlu0 %v714, 16
    %v760 = vpop.permute.xlu0 %759
    %761 = vrot.lane.b32.xlu0 %v715, 16
    %v762 = vpop.permute.xlu0 %761
    %763 = vrot.lane.b32.xlu0 %v716, 16
    %v764 = vpop.permute.xlu0 %763
    %vm781 = vcmask 261248
    %782 = vst.msk [vmem:[%s3] sm:$0xff] %vm781, %v734
    %783 = vst.msk [vmem:[%s3 + $0x8] sm:$0xff] %vm781, %v736
    %784 = vst.msk [vmem:[%s3 + $0x10] sm:$0xff] %vm781, %v738
    %785 = vst.msk [vmem:[%s3 + $0x18] sm:$0xff] %vm781, %v740
    %786 = vst.msk [vmem:[%s3 + $0x20] sm:$0xff] %vm781, %v742
    %787 = vst.msk [vmem:[%s3 + $0x28] sm:$0xff] %vm781, %v744
    %788 = vst.msk [vmem:[%s3 + $0x30] sm:$0xff] %vm781, %v746
    %789 = vst.msk [vmem:[%s3 + $0x38] sm:$0xff] %vm781, %v748
    %790 = vst.msk [vmem:[%s3 + $0x40] sm:$0xff] %vm781, %v750
    %791 = vst.msk [vmem:[%s3 + $0x48] sm:$0xff] %vm781, %v752
    %792 = vst.msk [vmem:[%s3 + $0x50] sm:$0xff] %vm781, %v754
    %793 = vst.msk [vmem:[%s3 + $0x58] sm:$0xff] %vm781, %v756
    %794 = vst.msk [vmem:[%s3 + $0x60] sm:$0xff] %vm781, %v758
    %795 = vst.msk [vmem:[%s3 + $0x68] sm:$0xff] %vm781, %v760
    %796 = vst.msk [vmem:[%s3 + $0x70] sm:$0xff] %vm781, %v762
    %797 = vst.msk [vmem:[%s3 + $0x78] sm:$0xff] %vm781, %v764
  $region21: #{tpu_custom_call.1} parent=0 // pred_fallthru
    _
  // Predicated region
  $region22: #{tpu_custom_call.1} parent=0 // pred_check
    _
  $region23: #{tpu_custom_call.1} parent=0 // pred_check_branch
    %799 = sbr.rel (0) target = $region25
  $region24: #{tpu_custom_call.1} parent=0 // pred_region
    _
  $region25: #{tpu_custom_call.1} parent=0 // pred_fallthru
    _
  // Predicated region
  $region26: #{tpu_custom_call.1} parent=0 // pred_check
    _
  $region27: #{tpu_custom_call.1} parent=0 // pred_check_branch
    %801 = sbr.rel (0) target = $region29
  $region28: #{tpu_custom_call.1} parent=0 // pred_region
    _
  $region29: #{tpu_custom_call.1} parent=0 // pred_fallthru
    _

</llo_original>
